<compile_context>
chip_gen: v7x
topology: tpu7x:2x2x1
jax: 0.10.0
libtpu: 0.0.40
codegen_flags: <defaults>
</compile_context>

<pallas_src>
import math

import jax
import jax.numpy as jnp
from jax.experimental import pallas as pl
from jax.experimental.pallas import tpu as pltpu


def _pe_add_kernel(x_ref, pe_ref, o_ref):
    # x_ref / o_ref: (tb, tc) lane-dense tiles; pe_ref: (1, tc), broadcast over
    # the sublane (batch) axis.  Pure VPU elementwise add, fully hidden under DMA.
    o_ref[...] = x_ref[...] + pe_ref[...]
    # TODO(synk): dropout is p=0.0 in the module default -> identity; no RNG path emitted.


def make_positional_encoding(d_model: int, max_len: int = 24, dtype=jnp.float32):
    """Build the pe buffer exactly as the PyTorch __init__ does (odd d_model safe)."""
    position = jnp.arange(max_len, dtype=jnp.float32)[:, None]               # (max_len, 1)
    div_term = jnp.exp(
        jnp.arange(0, d_model, 2, dtype=jnp.float32) * (-math.log(10000.0) / d_model)
    )                                                                         # (ceil(d/2),)
    pe = jnp.zeros((1, max_len, d_model), dtype=jnp.float32)
    pe = pe.at[0, :, 0::2].set(jnp.sin(position * div_term))
    pe = pe.at[0, :, 1::2].set(jnp.cos(position * div_term[: d_model // 2]))
    return pe.astype(dtype)


def _choose_tiles(B: int, R: int, itemsize: int, tile_bytes: int):
    """Pick (tb, tc) block shape: prefer full-width rows (contiguous DMA), shrink
    the batch axis first, and only split the lane axis as a last resort."""
    # Sublane packing granule: 8 for 32-bit, 16 for 16-bit, 32 for 8-bit dtypes.
    sub = 8 * max(1, 4 // itemsize)
    row_bytes = max(R * itemsize, 1)

    if min(B, sub) * row_bytes <= tile_bytes:
        # Full-width rows: each (tb, R) tile is one contiguous HBM slab.
        tc = R
        max_tb = max(1, tile_bytes // row_bytes)
        if B <= max_tb:
            tb = B                                     # full extent -> no (8,128) constraint
        else:
            tb = max(sub, (max_tb // sub) * sub)       # multiple of the sublane granule
    else:
        # Rows too long even for a handful of them -> split the lane axis.
        tb = B if B <= sub else sub
        max_tc = max(128, (tile_bytes // max(tb * itemsize, 1)) // 128 * 128)
        tc = R if R <= max_tc else max_tc

    # Megacore: if a large problem collapses to a single grid step, force >= 2
    # steps so both TensorCores (v7x) get work.  Neutral-to-2x, no downside.
    total_bytes = B * R * itemsize
    if total_bytes > (2 << 20) and pl.cdiv(B, tb) * pl.cdiv(R, tc) == 1:
        if B >= 2 * sub:
            tb = ((B + 1) // 2 + sub - 1) // sub * sub
        elif tc == R and R >= 2 * 128:
            tc = ((R + 1) // 2 + 127) // 128 * 128
    return tb, tc


def positional_encoding_forward(
    x: jax.Array,
    pe: jax.Array,
    *,
    tile_bytes: int = 8 << 20,        # ~8 MiB tiles: near-roofline on v6e/v7x, OK on v5e
    donate_x: bool = False,
    min_pallas_bytes: int = 1 << 20,  # below this, a fused XLA add beats kernel launch cost
) -> jax.Array:
    """x: (B, S, D); pe: (1, max_len, D). Returns x + pe[:, :S] (dropout p=0)."""
    B, S, D = x.shape
    assert pe.ndim == 3 and pe.shape[0] == 1 and pe.shape[2] == D and S <= pe.shape[1]

    itemsize = jnp.dtype(x.dtype).itemsize
    total_bytes = B * S * D * itemsize

    # NOTE: pe is cast to x.dtype once before the add.  For bf16 x this rounds pe
    # before adding (PyTorch promotes to f32, adds, then the caller may downcast);
    # the difference is negligible for positional encodings.
    if total_bytes < min_pallas_bytes:
        # Small-size bypass: at the module's real shapes (a few KiB) the pallas_call
        # launch + DMA round trip dominates; let XLA fuse the add instead.
        return x + pe[:, :S].astype(x.dtype)

    # Fold trailing dims: lane-dense 2D view (last dim multiple of 128 for D>=... or full).
    R = S * D
    x2 = x.reshape(B, R)
    pe2 = pe[:, :S, :].reshape(1, R).astype(x.dtype)   # single cast, outside the kernel

    tb, tc = _choose_tiles(B, R, itemsize, tile_bytes)
    n_b = pl.cdiv(B, tb)
    n_c = pl.cdiv(R, tc)

    # Double-buffered working set: 2x x-tile + 2x out-tile + 2x pe-tile (+ slack).
    tile_b = tb * tc * itemsize
    ws = 4 * tile_b + 2 * tc * itemsize
    vmem_limit = int(min(48 << 20, max(16 << 20, ws + (8 << 20))))

    grid_spec = pltpu.PrefetchScalarGridSpec(
        num_scalar_prefetch=0,
        # Column axis OUTERMOST so the pe block index is constant on the inner
        # (batch) axis -> Pallas keeps the pe tile resident instead of re-DMAing it.
        grid=(n_c, n_b),
        in_specs=[
            pl.BlockSpec((tb, tc), lambda c, b: (b, c)),   # x tile
            pl.BlockSpec((1, tc), lambda c, b: (0, c)),    # pe tile (broadcast over batch)
        ],
        out_specs=pl.BlockSpec((tb, tc), lambda c, b: (b, c)),
    )

    out2 = pl.pallas_call(
        _pe_add_kernel,
        out_shape=jax.ShapeDtypeStruct((B, R), x.dtype),
        grid_spec=grid_spec,
        compiler_params=pltpu.CompilerParams(
            # Both axes independent -> shardable across v7x's 2 TensorCores.
            dimension_semantics=("parallel", "parallel"),
            vmem_limit_bytes=vmem_limit,
        ),
        # Optional: reuse x's HBM buffer for the output (caller must not need x afterwards).
        input_output_aliases=({0: 0} if donate_x else {}),
    )(x2, pe2)

    return out2.reshape(B, S, D)


if __name__ == "__main__":
    # Small shapes consistent with the module: d_model=32, max_len=24,
    # input x of shape (batch=2, seq=8, d_model=32).
    B, S, D, MAX_LEN = 2, 8, 32, 24

    key = jax.random.PRNGKey(0)
    x = jax.random.normal(key, (B, S, D), dtype=jnp.float32)

    pe = make_positional_encoding(D, max_len=MAX_LEN, dtype=jnp.float32)

    # Reference in plain JAX (same semantics as the PyTorch forward, dropout p=0).
    ref = x + pe[:, :S]

    # Force the Pallas path (bypass would otherwise handle this tiny shape).
    out = positional_encoding_forward(x, pe, min_pallas_bytes=0)
    out = jax.block_until_ready(out)
    assert out.shape == (B, S, D)
    assert jnp.allclose(out, ref, atol=1e-6, rtol=1e-6)

    # Also exercise the small-size bypass path (default threshold).
    out_bypass = jax.block_until_ready(positional_encoding_forward(x, pe))
    assert jnp.allclose(out_bypass, ref, atol=1e-6, rtol=1e-6)

    print("KERNEL_OK")
</pallas_src>

<mosaic_0001>
module attributes {stable_mosaic.version = 11 : i64} {
  func.func @_pe_add_kernel(%arg0: i32, %arg1: i32, %arg2: memref<2x256xf32, #tpu.memory_space<vmem>>, %arg3: memref<1x256xf32, #tpu.memory_space<vmem>>, %arg4: memref<2x256xf32, #tpu.memory_space<vmem>>) attributes {dimension_semantics = [#tpu.dimension_semantics<parallel>, #tpu.dimension_semantics<parallel>], iteration_bounds = array<i64: 1, 1>, scalar_prefetch = 0 : i64, scratch_operands = 0 : i64, tpu.core_type = #tpu.core_type<tc>, window_params = [{transform_indices = @transform_0, window_bounds = array<i64: 2, 256>}, {transform_indices = @transform_1, window_bounds = array<i64: 1, 256>}, {transform_indices = @transform_2, window_bounds = array<i64: 2, 256>}]} {
    %c0 = arith.constant 0 : index
    %c0_0 = arith.constant 0 : index
    %0 = vector.load %arg2[%c0, %c0_0] : memref<2x256xf32, #tpu.memory_space<vmem>>, vector<2x256xf32>
    %c0_1 = arith.constant 0 : index
    %c0_2 = arith.constant 0 : index
    %1 = vector.load %arg3[%c0_1, %c0_2] : memref<1x256xf32, #tpu.memory_space<vmem>>, vector<1x256xf32>
    %2 = vector.broadcast %1 : vector<1x256xf32> to vector<2x256xf32>
    %3 = arith.addf %0, %2 : vector<2x256xf32>
    %c0_3 = arith.constant 0 : index
    %c0_4 = arith.constant 0 : index
    %4 = vector.load %arg4[%c0_3, %c0_4] : memref<2x256xf32, #tpu.memory_space<vmem>>, vector<2x256xf32>
    tpu.vector_store %arg4[%c0_3, %c0_4], %3 {strides = array<i32>} : memref<2x256xf32, #tpu.memory_space<vmem>>, vector<2x256xf32>,
    return
  }
  func.func @transform_0(%arg0: i32, %arg1: i32) -> (i32, i32) {
    %c0_i32 = arith.constant 0 : i32
    return %arg1, %arg0 : i32, i32
  }
  func.func @transform_1(%arg0: i32, %arg1: i32) -> (i32, i32) {
    %c0_i32 = arith.constant 0 : i32
    %c0_i32_0 = arith.constant 0 : i32
    return %c0_i32, %arg0 : i32, i32
  }
  func.func @transform_2(%arg0: i32, %arg1: i32) -> (i32, i32) {
    %c0_i32 = arith.constant 0 : i32
    return %arg1, %arg0 : i32, i32
  }
}

</mosaic_0001>

<llo_original>
// kernel: tpu_custom_call.1
$region0: #{tpu_custom_call.1}
  #allocation0 [shape = 'u32[]', space=smem, size = 0x4, offset = 0x4, fixed_abs, tag = 'smem constant byte address 0x4 - core index']
  #allocation1 [shape = 'u32[144,128]{1,0:T(1,128)}', space=vmem, size = 0x12000, scoped, tag = 'internal scratch']
  %s0 = inlined_call_operand.hbm [shape: f32[2,256], index: 0, kind: input, shape index: {}]
  %s1 = inlined_call_operand.vmem [shape: f32[1,256], index: 1, kind: input, shape index: {}]
  %s2 = inlined_call_operand.hbm [shape: f32[2,256], index: 2, kind: output, shape index: {}]
  %s3 = sld [smem:[#allocation0]]
  $region22: #{tpu_custom_call.1} parent=0
    _
  %s5 = ssub.s32 1, %s3
  %s6 = scalar_select 0, %s5, %s3
  $region1: #{tpu_custom_call.1} parent=0
    #allocation2 [shape = 'u8[2048]{0}', space=vmem, size = 0x800, scoped, tag = 'input window, operand 0, single buffered']
    #allocation3 [shape = 's32[1]{0}', space=sflag, size = 0x4, scoped, tag = 'scoped memory for tpu_custom_call.1']
    #allocation4 [shape = 's32[1]{0}', space=sflag, size = 0x4, scoped, tag = 'scoped memory for tpu_custom_call.1']
    #allocation5 [shape = 'u8[2048]{0}', space=vmem, size = 0x800, scoped, tag = 'output window, operand 0, single buffered']
    %7 = vsyncpa [#allocation3], 0
    %8 = vsyncpa [#allocation4], 0
    // Predicated region
    $region2: #{tpu_custom_call.1} parent=1 // pred_check
      _
    $region3: #{tpu_custom_call.1} parent=1 // pred_check_branch
      %10 = sbr.rel (0) target = $region5
    $region4: #{tpu_custom_call.1} parent=1 // pred_region
      %s12 = ssub.s32 64, 64
      %13 = vsyncadd [#allocation3], %s12
      %s15 = sshll.u32 [#allocation2], 4
      %s16 = int_to_ptr.vmem [resolvable:$true] %s15
      %18 = dma.hbm_to_vmem [thread:$0]  %s0, 64, %s16, [#allocation3]
    $region5: #{tpu_custom_call.1} parent=1 // pred_fallthru
      _
    // Predicated region
    $region6: #{tpu_custom_call.1} parent=1 // pred_check
      _
    $region7: #{tpu_custom_call.1} parent=1 // pred_check_branch
      %20 = sbr.rel (0) target = $region9
    $region8: #{tpu_custom_call.1} parent=1 // pred_region
      _
    $region9: #{tpu_custom_call.1} parent=1 // pred_fallthru
      _
    // Predicated region
    $region10: #{tpu_custom_call.1} parent=1 // pred_check
      _
    $region11: #{tpu_custom_call.1} parent=1 // pred_check_branch
      %22 = sbr.rel (0) target = $region13
    $region12: #{tpu_custom_call.1} parent=1 // pred_region
      %23 = dma.done [#allocation3], 64
    $region13: #{tpu_custom_call.1} parent=1 // pred_fallthru
      _
    %v24 = vld [vmem:[#allocation2] sm:$0xf]
    %v25 = vld [vmem:[%s1] sm:$0x3]
    %v27 = vlaneseq
    %v28 = vshrl.u32 %v27, 7
    %v29 = vsub.s32 0, %v28
    %v30 = vrot.slane %v25, %v29
    %v31 = vlaneseq
    %v32 = vshrl.u32 %v31, 7
    %v33 = vsub.s32 1, %v32
    %v34 = vrot.slane %v25, %v33
    %v35 = vcombine.low %v30, %v34
    %v37 = vunpack.c.l.s4 1983009808
    %v38 = vunpack.c.0.s8 %v37
    %v39 = vlaneseq
    %v40 = vshrl.u32 %v39, 7
    %v41 = vsub.s32 %v38, %v40
    %v42 = vrot.slane %v35, %v41
    %v44 = vadd.f32 %v24, %v42
    %45 = vst [vmem:[#allocation5] sm:$0xf] %v44
    // Predicated region
    $region14: #{tpu_custom_call.1} parent=1 // pred_check
      _
    $region15: #{tpu_custom_call.1} parent=1 // pred_check_branch
      %47 = sbr.rel (0) target = $region17
    $region16: #{tpu_custom_call.1} parent=1 // pred_region
      %s49 = ssub.s32 64, 64
      %50 = vsyncadd [#allocation4], %s49
      %s52 = sshll.u32 [#allocation5], 4
      %s53 = int_to_ptr.vmem [resolvable:$true] %s52
      %55 = dma.vmem_to_hbm [thread:$0]  %s53, 64, %s2, [#allocation4]
    $region17: #{tpu_custom_call.1} parent=1 // pred_fallthru
      _
    // Predicated region
    $region18: #{tpu_custom_call.1} parent=1 // pred_check
      _
    $region19: #{tpu_custom_call.1} parent=1 // pred_check_branch
      %57 = sbr.rel (0) target = $region21
    $region20: #{tpu_custom_call.1} parent=1 // pred_region
      %58 = dma.done [#allocation4], 64
    $region21: #{tpu_custom_call.1} parent=1 // pred_fallthru
      _
    %59 = vsyncpa [#allocation3], 1
    %60 = vsyncpa [#allocation4], 1

</llo_original>
